<compile_context>
chip_gen: v7x
topology: tpu7x:2x2x1
jax: 0.10.0
libtpu: 0.0.40
codegen_flags: <defaults>
</compile_context>

<pallas_src>
import functools

import jax
import jax.numpy as jnp
from jax.experimental import pallas as pl
from jax.experimental.pallas import tpu as pltpu


def _round_up(x, m):
    return ((x + m - 1) // m) * m


def _dqn_kernel(x_ref, w1_ref, w2_ref, w3_ref, w4_ref, b_ref, o_ref,
                *, hidden, nb_actions):
    """One batch tile through the whole MLP. b_ref is the packed (4, bmax) bias."""
    x = x_ref[...]

    h = jnp.dot(x, w1_ref[...], preferred_element_type=jnp.float32) + b_ref[0:1, :hidden]
    h = jnp.maximum(h, 0.0)

    h = jnp.dot(h, w2_ref[...], preferred_element_type=jnp.float32) + b_ref[1:2, :hidden]
    h = jnp.maximum(h, 0.0)

    h = jnp.dot(h, w3_ref[...], preferred_element_type=jnp.float32) + b_ref[2:3, :hidden]
    h = jnp.maximum(h, 0.0)

    out = jnp.dot(h, w4_ref[...], preferred_element_type=jnp.float32) + b_ref[3:4, :nb_actions]
    o_ref[...] = out.astype(o_ref.dtype)


def dqn_forward(x, params, *, block_batch=256):
    """x: (batch, nb_states) f32. params: list of (W, b), W is (in, out), b is (out,)."""
    (w1, b1), (w2, b2), (w3, b3), (w4, b4) = params
    batch, nb_states = x.shape
    hidden = w1.shape[1]
    nb_actions = w4.shape[1]

    # Pack the four tiny biases into a single VMEM operand (rows zero-padded).
    bmax = max(hidden, nb_actions)
    bias_pack = jnp.zeros((4, bmax), jnp.float32)
    bias_pack = bias_pack.at[0, :hidden].set(b1)
    bias_pack = bias_pack.at[1, :hidden].set(b2)
    bias_pack = bias_pack.at[2, :hidden].set(b3)
    bias_pack = bias_pack.at[3, :nb_actions].set(b4)

    # Batch tiling: fill the MXU when batch is large, single block when small.
    bt = min(block_batch, _round_up(batch, 8))
    padded_batch = _round_up(batch, bt)
    x_in = x if padded_batch == batch else jnp.pad(x, ((0, padded_batch - batch), (0, 0)))
    num_blocks = padded_batch // bt

    flops = 2 * padded_batch * (nb_states * hidden + 2 * hidden * hidden + hidden * nb_actions)
    bytes_accessed = 4 * (x_in.size + w1.size + w2.size + w3.size + w4.size
                          + bias_pack.size + padded_batch * nb_actions)

    kernel = functools.partial(_dqn_kernel, hidden=hidden, nb_actions=nb_actions)

    # Constant index_map -> weights/biases stay VMEM-resident across grid steps.
    const = lambda arr: pl.BlockSpec(arr.shape, lambda i: (0,) * arr.ndim)

    out = pl.pallas_call(
        kernel,
        out_shape=jax.ShapeDtypeStruct((padded_batch, nb_actions), jnp.float32),
        grid=(num_blocks,),
        in_specs=[
            pl.BlockSpec((bt, nb_states), lambda i: (i, 0)),
            const(w1), const(w2), const(w3), const(w4),
            const(bias_pack),
        ],
        out_specs=pl.BlockSpec((bt, nb_actions), lambda i: (i, 0)),
        compiler_params=pltpu.CompilerParams(
            dimension_semantics=("parallel",),          # megacore batch sharding on v7x
            vmem_limit_bytes=64 * 1024 * 1024,
        ),
        cost_estimate=pl.CostEstimate(
            flops=flops, transcendentals=0, bytes_accessed=bytes_accessed),
    )(x_in, w1, w2, w3, w4, bias_pack)

    return out if padded_batch == batch else out[:batch]


def init_dqn_params(key, nb_states, hidden_dim, nb_actions):
    """Deterministic PyTorch-style (uniform +-1/sqrt(fan_in)) init. Weights stored (in, out)."""
    dims = [(nb_states, hidden_dim),
            (hidden_dim, hidden_dim),
            (hidden_dim, hidden_dim),
            (hidden_dim, nb_actions)]
    params = []
    for fan_in, fan_out in dims:
        key, kw, kb = jax.random.split(key, 3)
        bound = 1.0 / jnp.sqrt(jnp.float32(fan_in))
        w = jax.random.uniform(kw, (fan_in, fan_out), jnp.float32, -bound, bound)
        b = jax.random.uniform(kb, (fan_out,), jnp.float32, -bound, bound)
        params.append((w, b))
    return params


def dqn_reference(x, params):
    h = x
    for i, (w, b) in enumerate(params):
        h = h @ w + b
        if i < len(params) - 1:
            h = jnp.maximum(h, 0.0)
    return h


if __name__ == "__main__":
    # config = {'nb_states': 16, 'hidden_dim': 32, 'nb_actions': 4}
    nb_states, hidden_dim, nb_actions = 16, 32, 4
    batch = 8

    key = jax.random.PRNGKey(0)
    key, kx = jax.random.split(key)
    x = jax.random.normal(kx, (batch, nb_states), jnp.float32)

    params = init_dqn_params(key, nb_states, hidden_dim, nb_actions)

    # Small-batch (single block) path.
    out = jax.block_until_ready(dqn_forward(x, params))
    ref = dqn_reference(x, params)
    assert out.shape == (batch, nb_actions)
    assert jnp.allclose(out, ref, atol=1e-5, rtol=1e-5), "mismatch vs reference (small batch)"

    # Larger batch exercises the tiled / multi-block / padded path.
    key, kb = jax.random.split(key)
    xb = jax.random.normal(kb, (640, nb_states), jnp.float32)
    out_b = jax.block_until_ready(dqn_forward(xb, params))
    ref_b = dqn_reference(xb, params)
    assert out_b.shape == (640, nb_actions)
    assert jnp.allclose(out_b, ref_b, atol=1e-4, rtol=1e-4), "mismatch vs reference (big batch)"

    print("KERNEL_OK")
</pallas_src>

<mosaic_0001>
module attributes {stable_mosaic.version = 11 : i64} {
  func.func @_dqn_kernel(%arg0: i32, %arg1: memref<8x16xf32, #tpu.memory_space<vmem>>, %arg2: memref<16x32xf32, #tpu.memory_space<vmem>>, %arg3: memref<32x32xf32, #tpu.memory_space<vmem>>, %arg4: memref<32x32xf32, #tpu.memory_space<vmem>>, %arg5: memref<32x4xf32, #tpu.memory_space<vmem>>, %arg6: memref<4x32xf32, #tpu.memory_space<vmem>>, %arg7: memref<8x4xf32, #tpu.memory_space<vmem>>) attributes {dimension_semantics = [#tpu.dimension_semantics<parallel>], iteration_bounds = array<i64: 1>, scalar_prefetch = 0 : i64, scratch_operands = 0 : i64, tpu.core_type = #tpu.core_type<tc>, window_params = [{transform_indices = @transform_0, window_bounds = array<i64: 8, 16>}, {pipeline_mode = #tpu.pipeline_mode<synchronous>, transform_indices = @transform_1, window_bounds = array<i64: 16, 32>}, {pipeline_mode = #tpu.pipeline_mode<synchronous>, transform_indices = @transform_2, window_bounds = array<i64: 32, 32>}, {pipeline_mode = #tpu.pipeline_mode<synchronous>, transform_indices = @transform_3, window_bounds = array<i64: 32, 32>}, {pipeline_mode = #tpu.pipeline_mode<synchronous>, transform_indices = @transform_4, window_bounds = array<i64: 32, 4>}, {pipeline_mode = #tpu.pipeline_mode<synchronous>, transform_indices = @transform_5, window_bounds = array<i64: 4, 32>}, {transform_indices = @transform_6, window_bounds = array<i64: 8, 4>}]} {
    %c0 = arith.constant 0 : index
    %c0_0 = arith.constant 0 : index
    %0 = vector.load %arg1[%c0, %c0_0] : memref<8x16xf32, #tpu.memory_space<vmem>>, vector<8x16xf32>
    %c0_1 = arith.constant 0 : index
    %c0_2 = arith.constant 0 : index
    %1 = vector.load %arg2[%c0_1, %c0_2] : memref<16x32xf32, #tpu.memory_space<vmem>>, vector<16x32xf32>
    %cst = arith.constant dense<0.000000e+00> : vector<8x32xf32>
    %2 = tpu.matmul %0, %1, %cst {dimension_numbers = #tpu.dot_dimension_numbers<[1], [0], [0], [1], [0, 0, 1, 1], [], []>} : vector<8x16xf32>, vector<16x32xf32>, vector<8x32xf32> -> vector<8x32xf32>
    %c0_3 = arith.constant 0 : index
    %c0_4 = arith.constant 0 : index
    %3 = vector.load %arg6[%c0_3, %c0_4] : memref<4x32xf32, #tpu.memory_space<vmem>>, vector<1x32xf32>
    %4 = vector.broadcast %3 : vector<1x32xf32> to vector<8x32xf32>
    %5 = arith.addf %2, %4 : vector<8x32xf32>
    %cst_5 = arith.constant 0.000000e+00 : f32
    %6 = vector.broadcast %cst_5 : f32 to vector<8x32xf32>
    %7 = arith.maximumf %5, %6 : vector<8x32xf32>
    %c0_6 = arith.constant 0 : index
    %c0_7 = arith.constant 0 : index
    %8 = vector.load %arg3[%c0_6, %c0_7] : memref<32x32xf32, #tpu.memory_space<vmem>>, vector<32x32xf32>
    %cst_8 = arith.constant dense<0.000000e+00> : vector<8x32xf32>
    %9 = tpu.matmul %7, %8, %cst_8 {dimension_numbers = #tpu.dot_dimension_numbers<[1], [0], [0], [1], [0, 0, 1, 1], [], []>} : vector<8x32xf32>, vector<32x32xf32>, vector<8x32xf32> -> vector<8x32xf32>
    %c1 = arith.constant 1 : index
    %c0_9 = arith.constant 0 : index
    %10 = vector.load %arg6[%c1, %c0_9] : memref<4x32xf32, #tpu.memory_space<vmem>>, vector<1x32xf32>
    %11 = vector.broadcast %10 : vector<1x32xf32> to vector<8x32xf32>
    %12 = arith.addf %9, %11 : vector<8x32xf32>
    %cst_10 = arith.constant 0.000000e+00 : f32
    %13 = vector.broadcast %cst_10 : f32 to vector<8x32xf32>
    %14 = arith.maximumf %12, %13 : vector<8x32xf32>
    %c0_11 = arith.constant 0 : index
    %c0_12 = arith.constant 0 : index
    %15 = vector.load %arg4[%c0_11, %c0_12] : memref<32x32xf32, #tpu.memory_space<vmem>>, vector<32x32xf32>
    %cst_13 = arith.constant dense<0.000000e+00> : vector<8x32xf32>
    %16 = tpu.matmul %14, %15, %cst_13 {dimension_numbers = #tpu.dot_dimension_numbers<[1], [0], [0], [1], [0, 0, 1, 1], [], []>} : vector<8x32xf32>, vector<32x32xf32>, vector<8x32xf32> -> vector<8x32xf32>
    %c2 = arith.constant 2 : index
    %c0_14 = arith.constant 0 : index
    %17 = vector.load %arg6[%c2, %c0_14] : memref<4x32xf32, #tpu.memory_space<vmem>>, vector<1x32xf32>
    %18 = vector.broadcast %17 : vector<1x32xf32> to vector<8x32xf32>
    %19 = arith.addf %16, %18 : vector<8x32xf32>
    %cst_15 = arith.constant 0.000000e+00 : f32
    %20 = vector.broadcast %cst_15 : f32 to vector<8x32xf32>
    %21 = arith.maximumf %19, %20 : vector<8x32xf32>
    %c0_16 = arith.constant 0 : index
    %c0_17 = arith.constant 0 : index
    %22 = vector.load %arg5[%c0_16, %c0_17] : memref<32x4xf32, #tpu.memory_space<vmem>>, vector<32x4xf32>
    %cst_18 = arith.constant dense<0.000000e+00> : vector<8x4xf32>
    %23 = tpu.matmul %21, %22, %cst_18 {dimension_numbers = #tpu.dot_dimension_numbers<[1], [0], [0], [1], [0, 0, 1, 1], [], []>} : vector<8x32xf32>, vector<32x4xf32>, vector<8x4xf32> -> vector<8x4xf32>
    %c3 = arith.constant 3 : index
    %c0_19 = arith.constant 0 : index
    %24 = vector.load %arg6[%c3, %c0_19] : memref<4x32xf32, #tpu.memory_space<vmem>>, vector<1x4xf32>
    %25 = vector.broadcast %24 : vector<1x4xf32> to vector<8x4xf32>
    %26 = arith.addf %23, %25 : vector<8x4xf32>
    %c0_20 = arith.constant 0 : index
    %c0_21 = arith.constant 0 : index
    %27 = vector.load %arg7[%c0_20, %c0_21] : memref<8x4xf32, #tpu.memory_space<vmem>>, vector<8x4xf32>
    tpu.vector_store %arg7[%c0_20, %c0_21], %26 {strides = array<i32>} : memref<8x4xf32, #tpu.memory_space<vmem>>, vector<8x4xf32>,
    return
  }
  func.func @transform_0(%arg0: i32) -> (i32, i32) {
    %c0_i32 = arith.constant 0 : i32
    %c0_i32_0 = arith.constant 0 : i32
    return %arg0, %c0_i32 : i32, i32
  }
  func.func @transform_1(%arg0: i32) -> (i32, i32) {
    %c0_i32 = arith.constant 0 : i32
    %c0_i32_0 = arith.constant 0 : i32
    %c0_i32_1 = arith.constant 0 : i32
    return %c0_i32, %c0_i32_0 : i32, i32
  }
  func.func @transform_2(%arg0: i32) -> (i32, i32) {
    %c0_i32 = arith.constant 0 : i32
    %c0_i32_0 = arith.constant 0 : i32
    %c0_i32_1 = arith.constant 0 : i32
    return %c0_i32, %c0_i32_0 : i32, i32
  }
  func.func @transform_3(%arg0: i32) -> (i32, i32) {
    %c0_i32 = arith.constant 0 : i32
    %c0_i32_0 = arith.constant 0 : i32
    %c0_i32_1 = arith.constant 0 : i32
    return %c0_i32, %c0_i32_0 : i32, i32
  }
  func.func @transform_4(%arg0: i32) -> (i32, i32) {
    %c0_i32 = arith.constant 0 : i32
    %c0_i32_0 = arith.constant 0 : i32
    %c0_i32_1 = arith.constant 0 : i32
    return %c0_i32, %c0_i32_0 : i32, i32
  }
  func.func @transform_5(%arg0: i32) -> (i32, i32) {
    %c0_i32 = arith.constant 0 : i32
    %c0_i32_0 = arith.constant 0 : i32
    %c0_i32_1 = arith.constant 0 : i32
    return %c0_i32, %c0_i32_0 : i32, i32
  }
  func.func @transform_6(%arg0: i32) -> (i32, i32) {
    %c0_i32 = arith.constant 0 : i32
    %c0_i32_0 = arith.constant 0 : i32
    return %arg0, %c0_i32 : i32, i32
  }
}

</mosaic_0001>

<llo_original>
// kernel: tpu_custom_call.1
$region0: #{tpu_custom_call.1}
  #allocation0 [shape = 'u32[]', space=smem, size = 0x4, offset = 0x4, fixed_abs, tag = 'smem constant byte address 0x4 - core index']
  #allocation1 [shape = 'u32[144,128]{1,0:T(1,128)}', space=vmem, size = 0x12000, scoped, tag = 'internal scratch']
  %s0 = inlined_call_operand.hbm [shape: f32[8,16], index: 0, kind: input, shape index: {}]
  %s1 = inlined_call_operand.hbm [shape: f32[16,32], index: 1, kind: input, shape index: {}]
  %s2 = inlined_call_operand.hbm [shape: f32[32,32], index: 2, kind: input, shape index: {}]
  %s3 = inlined_call_operand.hbm [shape: f32[32,32], index: 3, kind: input, shape index: {}]
  %s4 = inlined_call_operand.hbm [shape: f32[32,4], index: 4, kind: input, shape index: {}]
  %s5 = inlined_call_operand.hbm [shape: f32[4,32], index: 5, kind: input, shape index: {}]
  %s6 = inlined_call_operand.hbm [shape: f32[8,4], index: 6, kind: output, shape index: {}]
  %s7 = sld [smem:[#allocation0]]
  $region58: #{tpu_custom_call.1} parent=0
    _
  %s9 = ssub.s32 1, %s7
  %s10 = scalar_select 0, %s9, %s7
  $region1: #{tpu_custom_call.1} parent=0
    #allocation2 [shape = 'u8[4096]{0}', space=vmem, size = 0x1000, scoped, tag = 'input window, operand 0, single buffered']
    #allocation3 [shape = 's32[1]{0}', space=sflag, size = 0x4, scoped, tag = 'scoped memory for tpu_custom_call.1']
    #allocation4 [shape = 's32[1]{0}', space=sflag, size = 0x4, scoped, tag = 'scoped memory for tpu_custom_call.1']
    #allocation5 [shape = 'u8[8192]{0}', space=vmem, size = 0x2000, scoped, tag = 'input window, operand 1, single buffered']
    #allocation6 [shape = 's32[1]{0}', space=sflag, size = 0x4, scoped, tag = 'scoped memory for tpu_custom_call.1']
    #allocation7 [shape = 'u8[16384]{0}', space=vmem, size = 0x4000, scoped, tag = 'input window, operand 2, single buffered']
    #allocation8 [shape = 'u8[16384]{0}', space=vmem, size = 0x4000, scoped, tag = 'input window, operand 3, single buffered']
    #allocation9 [shape = 's32[1]{0}', space=sflag, size = 0x4, scoped, tag = 'scoped memory for tpu_custom_call.1']
    #allocation10 [shape = 'u8[16384]{0}', space=vmem, size = 0x4000, scoped, tag = 'input window, operand 4, single buffered']
    #allocation11 [shape = 'u8[2048]{0}', space=vmem, size = 0x800, scoped, tag = 'input window, operand 5, single buffered']
    #allocation12 [shape = 's32[1]{0}', space=sflag, size = 0x4, scoped, tag = 'scoped memory for tpu_custom_call.1']
    #allocation13 [shape = 'u8[4096]{0}', space=vmem, size = 0x1000, scoped, tag = 'output window, operand 0, single buffered']
    %11 = vsyncpa [#allocation3], 0
    %12 = vsyncpa [#allocation6], 0
    %13 = vsyncpa [#allocation9], 0
    %14 = vsyncpa [#allocation12], 0
    %15 = vsyncpa [#allocation4], 0
    // Predicated region
    $region2: #{tpu_custom_call.1} parent=1 // pred_check
      _
    $region3: #{tpu_custom_call.1} parent=1 // pred_check_branch
      %17 = sbr.rel (0) target = $region5
    $region4: #{tpu_custom_call.1} parent=1 // pred_region
      %s19 = ssub.s32 128, 128
      %20 = vsyncadd [#allocation3], %s19
      %s22 = sshll.u32 [#allocation2], 4
      %s23 = int_to_ptr.vmem [resolvable:$true] %s22
      %25 = dma.hbm_to_vmem [thread:$0]  %s0, 128, %s23, [#allocation3]
    $region5: #{tpu_custom_call.1} parent=1 // pred_fallthru
      _
    // Predicated region
    $region6: #{tpu_custom_call.1} parent=1 // pred_check
      _
    $region7: #{tpu_custom_call.1} parent=1 // pred_check_branch
      %27 = sbr.rel (0) target = $region9
    $region8: #{tpu_custom_call.1} parent=1 // pred_region
      %s29 = ssub.s32 256, 256
      %30 = vsyncadd [#allocation6], %s29
      %s31 = sshll.u32 [#allocation5], 4
      %s32 = int_to_ptr.vmem [resolvable:$true] %s31
      %37 = dma.hbm_to_vmem [thread:$0]  %s1, 256, %s32, [#allocation6], 128, 128, 8
    $region9: #{tpu_custom_call.1} parent=1 // pred_fallthru
      _
    // Predicated region
    $region10: #{tpu_custom_call.1} parent=1 // pred_check
      _
    $region11: #{tpu_custom_call.1} parent=1 // pred_check_branch
      %39 = sbr.rel (0) target = $region13
    $region12: #{tpu_custom_call.1} parent=1 // pred_region
      %s41 = ssub.s32 512, 512
      %42 = vsyncadd [#allocation6], %s41
      %s43 = sshll.u32 [#allocation7], 4
      %s44 = int_to_ptr.vmem [resolvable:$true] %s43
      %49 = dma.hbm_to_vmem [thread:$0]  %s2, 512, %s44, [#allocation6], 128, 128, 8
    $region13: #{tpu_custom_call.1} parent=1 // pred_fallthru
      _
    // Predicated region
    $region14: #{tpu_custom_call.1} parent=1 // pred_check
      _
    $region15: #{tpu_custom_call.1} parent=1 // pred_check_branch
      %51 = sbr.rel (0) target = $region17
    $region16: #{tpu_custom_call.1} parent=1 // pred_region
      %s53 = ssub.s32 512, 512
      %54 = vsyncadd [#allocation9], %s53
      %s55 = sshll.u32 [#allocation8], 4
      %s56 = int_to_ptr.vmem [resolvable:$true] %s55
      %61 = dma.hbm_to_vmem [thread:$0]  %s3, 512, %s56, [#allocation9], 128, 128, 8
    $region17: #{tpu_custom_call.1} parent=1 // pred_fallthru
      _
    // Predicated region
    $region18: #{tpu_custom_call.1} parent=1 // pred_check
      _
    $region19: #{tpu_custom_call.1} parent=1 // pred_check_branch
      %63 = sbr.rel (0) target = $region21
    $region20: #{tpu_custom_call.1} parent=1 // pred_region
      %s65 = ssub.s32 512, 512
      %66 = vsyncadd [#allocation9], %s65
      %s67 = sshll.u32 [#allocation10], 4
      %s68 = int_to_ptr.vmem [resolvable:$true] %s67
      %73 = dma.hbm_to_vmem [thread:$0]  %s4, 512, %s68, [#allocation9], 128, 128, 8
    $region21: #{tpu_custom_call.1} parent=1 // pred_fallthru
      _
    // Predicated region
    $region22: #{tpu_custom_call.1} parent=1 // pred_check
      _
    $region23: #{tpu_custom_call.1} parent=1 // pred_check_branch
      %75 = sbr.rel (0) target = $region25
    $region24: #{tpu_custom_call.1} parent=1 // pred_region
      %s77 = ssub.s32 64, 64
      %78 = vsyncadd [#allocation12], %s77
      %s80 = sshll.u32 [#allocation11], 4
      %s81 = int_to_ptr.vmem [resolvable:$true] %s80
      %83 = dma.hbm_to_vmem [thread:$0]  %s5, 64, %s81, [#allocation12]
    $region25: #{tpu_custom_call.1} parent=1 // pred_fallthru
      _
    // Predicated region
    $region26: #{tpu_custom_call.1} parent=1 // pred_check
      _
    $region27: #{tpu_custom_call.1} parent=1 // pred_check_branch
      %85 = sbr.rel (0) target = $region29
    $region28: #{tpu_custom_call.1} parent=1 // pred_region
      %86 = dma.done [#allocation3], 128
    $region29: #{tpu_custom_call.1} parent=1 // pred_fallthru
      _
    // Predicated region
    $region30: #{tpu_custom_call.1} parent=1 // pred_check
      _
    $region31: #{tpu_custom_call.1} parent=1 // pred_check_branch
      %88 = sbr.rel (0) target = $region33
    $region32: #{tpu_custom_call.1} parent=1 // pred_region
      %89 = dma.done [#allocation6], 256
    $region33: #{tpu_custom_call.1} parent=1 // pred_fallthru
      _
    // Predicated region
    $region34: #{tpu_custom_call.1} parent=1 // pred_check
      _
    $region35: #{tpu_custom_call.1} parent=1 // pred_check_branch
      %91 = sbr.rel (0) target = $region37
    $region36: #{tpu_custom_call.1} parent=1 // pred_region
      %92 = dma.done [#allocation6], 512
    $region37: #{tpu_custom_call.1} parent=1 // pred_fallthru
      _
    // Predicated region
    $region38: #{tpu_custom_call.1} parent=1 // pred_check
      _
    $region39: #{tpu_custom_call.1} parent=1 // pred_check_branch
      %94 = sbr.rel (0) target = $region41
    $region40: #{tpu_custom_call.1} parent=1 // pred_region
      %95 = dma.done [#allocation9], 512
    $region41: #{tpu_custom_call.1} parent=1 // pred_fallthru
      _
    // Predicated region
    $region42: #{tpu_custom_call.1} parent=1 // pred_check
      _
    $region43: #{tpu_custom_call.1} parent=1 // pred_check_branch
      %97 = sbr.rel (0) target = $region45
    $region44: #{tpu_custom_call.1} parent=1 // pred_region
      %98 = dma.done [#allocation9], 512
    $region45: #{tpu_custom_call.1} parent=1 // pred_fallthru
      _
    // Predicated region
    $region46: #{tpu_custom_call.1} parent=1 // pred_check
      _
    $region47: #{tpu_custom_call.1} parent=1 // pred_check_branch
      %100 = sbr.rel (0) target = $region49
    $region48: #{tpu_custom_call.1} parent=1 // pred_region
      %101 = dma.done [#allocation12], 64
    $region49: #{tpu_custom_call.1} parent=1 // pred_fallthru
      _
    %v102 = vld [vmem:[#allocation2] sm:$0xff]
    %v103 = vld [vmem:[#allocation5] sm:$0xff]
    %v104 = vld [vmem:[#allocation5 + $0x8] sm:$0xff]
    %v105 = vld [vmem:[#allocation11] sm:$0x1]
    %v106 = vlaneseq
    %v107 = vshrl.u32 %v106, 7
    %v108 = vsub.s32 0, %v107
    %v109 = vrot.slane %v105, %v108
    %vm110 = vcmask 130048
    %v112 = vsel %vm110, %v102, 0
    %114 = vmatprep.subr.mxu0 0.0
    %115 = vmatpush1.msra.mxu0 %v103
    %116 = vmatprep.subr.mxu0 0.0
    %117 = vmatpush1.msra.mxu0 %v104
    %118 = vmatprep.subr.mxu0 0.0
    %119 = vmatpush1.msra.mxu0 0.0
    %120 = vmatprep.subr.mxu0 0.0
    %121 = vmatpush1.msra.mxu0 0.0
    %122 = vmatprep.subr.mxu0 0.0
    %123 = vmatpush1.msra.mxu0 0.0
    %124 = vmatprep.subr.mxu0 0.0
    %125 = vmatpush1.msra.mxu0 0.0
    %126 = vmatprep.subr.mxu0 0.0
    %127 = vmatpush1.msra.mxu0 0.0
    %128 = vmatprep.subr.mxu0 0.0
    %129 = vmatpush1.msra.mxu0 0.0
    %130 = vmatprep.subr.mxu0 0.0
    %131 = vmatpush1.msra.mxu0 0.0
    %132 = vmatprep.subr.mxu0 0.0
    %133 = vmatpush1.msra.mxu0 0.0
    %134 = vmatprep.subr.mxu0 0.0
    %135 = vmatpush1.msra.mxu0 0.0
    %136 = vmatprep.subr.mxu0 0.0
    %137 = vmatpush1.msra.mxu0 0.0
    %138 = vmatprep.subr.mxu0 0.0
    %139 = vmatpush1.msra.mxu0 0.0
    %140 = vmatprep.subr.mxu0 0.0
    %141 = vmatpush1.msra.mxu0 0.0
    %142 = vmatprep.subr.mxu0 0.0
    %143 = vmatpush1.msra.mxu0 0.0
    %144 = vmatprep.subr.mxu0 0.0
    %145 = vmatpush1.msra.mxu0 0.0
    %146 = vmatprep.subr.mxu0 0.0
    %147 = vmatpush1.msra.mxu0 0.0
    %148 = vmatprep.subr.mxu0 0.0
    %149 = vmatpush1.msra.mxu0 0.0
    %150 = vmatprep.subr.mxu0 0.0
    %151 = vmatpush1.msra.mxu0 0.0
    %152 = vmatprep.subr.mxu0 0.0
    %153 = vmatpush1.msra.mxu0 0.0
    %154 = vmatprep.subr.mxu0 0.0
    %155 = vmatpush1.msra.mxu0 0.0
    %156 = vmatprep.subr.mxu0 0.0
    %157 = vmatpush1.msra.mxu0 0.0
    %158 = vmatprep.subr.mxu0 0.0
    %159 = vmatpush1.msra.mxu0 0.0
    %160 = vmatprep.subr.mxu0 0.0
    %161 = vmatpush1.msra.mxu0 0.0
    %162 = vmatprep.subr.mxu0 0.0
    %163 = vmatpush1.msra.mxu0 0.0
    %164 = vmatprep.subr.mxu0 0.0
    %165 = vmatpush1.msra.mxu0 0.0
    %166 = vmatprep.subr.mxu0 0.0
    %167 = vmatpush1.msra.mxu0 0.0
    %168 = vmatprep.subr.mxu0 0.0
    %169 = vmatpush1.msra.mxu0 0.0
    %170 = vmatprep.subr.mxu0 0.0
    %171 = vmatpush1.msra.mxu0 0.0
    %172 = vmatprep.subr.mxu0 0.0
    %173 = vmatpush1.msra.mxu0 0.0
    %174 = vmatprep.subr.mxu0 0.0
    %175 = vmatpush1.msra.mxu0 0.0
    %176 = vmatprep.subr.mxu0 0.0
    %177 = vmatpush1.msra.mxu0 0.0
    %178 = vmatprep.mubr.f32.mxu0 0.0
    %179 = vmatmul.mubr.f32.gmra.mrb[0].mxu0 %v112
    %v180 = vpop.f32.mrb[0].mxu0
    %v181 = vadd.f32 %v109, %v180
    %v182 = vpop.f32.mrb[0].mxu0
    %183 = vdwg.mxu0
    %v184 = vmax.f32 %v181, 0.0
    %v185 = vld [vmem:[#allocation7] sm:$0xff]
    %v186 = vld [vmem:[#allocation7 + $0x8] sm:$0xff]
    %v187 = vld [vmem:[#allocation7 + $0x10] sm:$0xff]
    %v188 = vld [vmem:[#allocation7 + $0x18] sm:$0xff]
    %v189 = vld [vmem:[#allocation11 + $0x1] sm:$0x1]
    %v190 = vlaneseq
    %v191 = vshrl.u32 %v190, 7
    %v192 = vsub.s32 0, %v191
    %v193 = vrot.slane %v189, %v192
    %vm194 = vcmask 261120
    %v196 = vsel %vm194, %v184, 0
    %198 = vmatprep.subr.mxu0 0.0
    %199 = vmatpush1.msra.mxu0 %v185
    %200 = vmatprep.subr.mxu0 0.0
    %201 = vmatpush1.msra.mxu0 %v186
    %202 = vmatprep.subr.mxu0 0.0
    %203 = vmatpush1.msra.mxu0 %v187
    %204 = vmatprep.subr.mxu0 0.0
    %205 = vmatpush1.msra.mxu0 %v188
    %206 = vmatprep.subr.mxu0 0.0
    %207 = vmatpush1.msra.mxu0 0.0
    %208 = vmatprep.subr.mxu0 0.0
    %209 = vmatpush1.msra.mxu0 0.0
    %210 = vmatprep.subr.mxu0 0.0
    %211 = vmatpush1.msra.mxu0 0.0
    %212 = vmatprep.subr.mxu0 0.0
    %213 = vmatpush1.msra.mxu0 0.0
    %214 = vmatprep.subr.mxu0 0.0
    %215 = vmatpush1.msra.mxu0 0.0
    %216 = vmatprep.subr.mxu0 0.0
    %217 = vmatpush1.msra.mxu0 0.0
    %218 = vmatprep.subr.mxu0 0.0
    %219 = vmatpush1.msra.mxu0 0.0
    %220 = vmatprep.subr.mxu0 0.0
    %221 = vmatpush1.msra.mxu0 0.0
    %222 = vmatprep.subr.mxu0 0.0
    %223 = vmatpush1.msra.mxu0 0.0
    %224 = vmatprep.subr.mxu0 0.0
    %225 = vmatpush1.msra.mxu0 0.0
    %226 = vmatprep.subr.mxu0 0.0
    %227 = vmatpush1.msra.mxu0 0.0
    %228 = vmatprep.subr.mxu0 0.0
    %229 = vmatpush1.msra.mxu0 0.0
    %230 = vmatprep.subr.mxu0 0.0
    %231 = vmatpush1.msra.mxu0 0.0
    %232 = vmatprep.subr.mxu0 0.0
    %233 = vmatpush1.msra.mxu0 0.0
    %234 = vmatprep.subr.mxu0 0.0
    %235 = vmatpush1.msra.mxu0 0.0
    %236 = vmatprep.subr.mxu0 0.0
    %237 = vmatpush1.msra.mxu0 0.0
    %238 = vmatprep.subr.mxu0 0.0
    %239 = vmatpush1.msra.mxu0 0.0
    %240 = vmatprep.subr.mxu0 0.0
    %241 = vmatpush1.msra.mxu0 0.0
    %242 = vmatprep.subr.mxu0 0.0
    %243 = vmatpush1.msra.mxu0 0.0
    %244 = vmatprep.subr.mxu0 0.0
    %245 = vmatpush1.msra.mxu0 0.0
    %246 = vmatprep.subr.mxu0 0.0
    %247 = vmatpush1.msra.mxu0 0.0
    %248 = vmatprep.subr.mxu0 0.0
    %249 = vmatpush1.msra.mxu0 0.0
    %250 = vmatprep.subr.mxu0 0.0
    %251 = vmatpush1.msra.mxu0 0.0
    %252 = vmatprep.subr.mxu0 0.0
    %253 = vmatpush1.msra.mxu0 0.0
    %254 = vmatprep.subr.mxu0 0.0
    %255 = vmatpush1.msra.mxu0 0.0
    %256 = vmatprep.subr.mxu0 0.0
    %257 = vmatpush1.msra.mxu0 0.0
    %258 = vmatprep.subr.mxu0 0.0
    %259 = vmatpush1.msra.mxu0 0.0
    %260 = vmatprep.subr.mxu0 0.0
    %261 = vmatpush1.msra.mxu0 0.0
    %262 = vmatprep.mubr.f32.mxu0 0.0
    %263 = vmatmul.mubr.f32.gmra.mrb[0].mxu0 %v196
    %v264 = vpop.f32.mrb[0].mxu0
    %v265 = vadd.f32 %v193, %v264
    %v266 = vpop.f32.mrb[0].mxu0
    %267 = vdwg.mxu0
    %v268 = vmax.f32 %v265, 0.0
    %v269 = vld [vmem:[#allocation8] sm:$0xff]
    %v270 = vld [vmem:[#allocation8 + $0x8] sm:$0xff]
    %v271 = vld [vmem:[#allocation8 + $0x10] sm:$0xff]
    %v272 = vld [vmem:[#allocation8 + $0x18] sm:$0xff]
    %v273 = vld [vmem:[#allocation11 + $0x2] sm:$0x1]
    %v274 = vlaneseq
    %v275 = vshrl.u32 %v274, 7
    %v276 = vsub.s32 0, %v275
    %v277 = vrot.slane %v273, %v276
    %v279 = vsel %vm194, %v268, 0
    %281 = vmatprep.subr.mxu0 0.0
    %282 = vmatpush1.msra.mxu0 %v269
    %283 = vmatprep.subr.mxu0 0.0
    %284 = vmatpush1.msra.mxu0 %v270
    %285 = vmatprep.subr.mxu0 0.0
    %286 = vmatpush1.msra.mxu0 %v271
    %287 = vmatprep.subr.mxu0 0.0
    %288 = vmatpush1.msra.mxu0 %v272
    %289 = vmatprep.subr.mxu0 0.0
    %290 = vmatpush1.msra.mxu0 0.0
    %291 = vmatprep.subr.mxu0 0.0
    %292 = vmatpush1.msra.mxu0 0.0
    %293 = vmatprep.subr.mxu0 0.0
    %294 = vmatpush1.msra.mxu0 0.0
    %295 = vmatprep.subr.mxu0 0.0
    %296 = vmatpush1.msra.mxu0 0.0
    %297 = vmatprep.subr.mxu0 0.0
    %298 = vmatpush1.msra.mxu0 0.0
    %299 = vmatprep.subr.mxu0 0.0
    %300 = vmatpush1.msra.mxu0 0.0
    %301 = vmatprep.subr.mxu0 0.0
    %302 = vmatpush1.msra.mxu0 0.0
    %303 = vmatprep.subr.mxu0 0.0
    %304 = vmatpush1.msra.mxu0 0.0
    %305 = vmatprep.subr.mxu0 0.0
    %306 = vmatpush1.msra.mxu0 0.0
    %307 = vmatprep.subr.mxu0 0.0
    %308 = vmatpush1.msra.mxu0 0.0
    %309 = vmatprep.subr.mxu0 0.0
    %310 = vmatpush1.msra.mxu0 0.0
    %311 = vmatprep.subr.mxu0 0.0
    %312 = vmatpush1.msra.mxu0 0.0
    %313 = vmatprep.subr.mxu0 0.0
    %314 = vmatpush1.msra.mxu0 0.0
    %315 = vmatprep.subr.mxu0 0.0
    %316 = vmatpush1.msra.mxu0 0.0
    %317 = vmatprep.subr.mxu0 0.0
    %318 = vmatpush1.msra.mxu0 0.0
    %319 = vmatprep.subr.mxu0 0.0
    %320 = vmatpush1.msra.mxu0 0.0
    %321 = vmatprep.subr.mxu0 0.0
    %322 = vmatpush1.msra.mxu0 0.0
    %323 = vmatprep.subr.mxu0 0.0
    %324 = vmatpush1.msra.mxu0 0.0
    %325 = vmatprep.subr.mxu0 0.0
    %326 = vmatpush1.msra.mxu0 0.0
    %327 = vmatprep.subr.mxu0 0.0
    %328 = vmatpush1.msra.mxu0 0.0
    %329 = vmatprep.subr.mxu0 0.0
    %330 = vmatpush1.msra.mxu0 0.0
    %331 = vmatprep.subr.mxu0 0.0
    %332 = vmatpush1.msra.mxu0 0.0
    %333 = vmatprep.subr.mxu0 0.0
    %334 = vmatpush1.msra.mxu0 0.0
    %335 = vmatprep.subr.mxu0 0.0
    %336 = vmatpush1.msra.mxu0 0.0
    %337 = vmatprep.subr.mxu0 0.0
    %338 = vmatpush1.msra.mxu0 0.0
    %339 = vmatprep.subr.mxu0 0.0
    %340 = vmatpush1.msra.mxu0 0.0
    %341 = vmatprep.subr.mxu0 0.0
    %342 = vmatpush1.msra.mxu0 0.0
    %343 = vmatprep.subr.mxu0 0.0
    %344 = vmatpush1.msra.mxu0 0.0
    %345 = vmatprep.mubr.f32.mxu0 0.0
    %346 = vmatmul.mubr.f32.gmra.mrb[0].mxu0 %v279
    %v347 = vpop.f32.mrb[0].mxu0
    %v348 = vadd.f32 %v277, %v347
    %v349 = vpop.f32.mrb[0].mxu0
    %350 = vdwg.mxu0
    %v351 = vmax.f32 %v348, 0.0
    %v352 = vld [vmem:[#allocation10] sm:$0xff]
    %v353 = vld [vmem:[#allocation10 + $0x8] sm:$0xff]
    %v354 = vld [vmem:[#allocation10 + $0x10] sm:$0xff]
    %v355 = vld [vmem:[#allocation10 + $0x18] sm:$0xff]
    %v356 = vld [vmem:[#allocation11 + $0x3] sm:$0x1]
    %v357 = vlaneseq
    %v358 = vshrl.u32 %v357, 7
    %v359 = vsub.s32 0, %v358
    %v360 = vrot.slane %v356, %v359
    %v362 = vsel %vm194, %v351, 0
    %364 = vmatprep.subr.mxu0 0.0
    %365 = vmatpush1.msra.mxu0 %v352
    %366 = vmatprep.subr.mxu0 0.0
    %367 = vmatpush1.msra.mxu0 %v353
    %368 = vmatprep.subr.mxu0 0.0
    %369 = vmatpush1.msra.mxu0 %v354
    %370 = vmatprep.subr.mxu0 0.0
    %371 = vmatpush1.msra.mxu0 %v355
    %372 = vmatprep.subr.mxu0 0.0
    %373 = vmatpush1.msra.mxu0 0.0
    %374 = vmatprep.subr.mxu0 0.0
    %375 = vmatpush1.msra.mxu0 0.0
    %376 = vmatprep.subr.mxu0 0.0
    %377 = vmatpush1.msra.mxu0 0.0
    %378 = vmatprep.subr.mxu0 0.0
    %379 = vmatpush1.msra.mxu0 0.0
    %380 = vmatprep.subr.mxu0 0.0
    %381 = vmatpush1.msra.mxu0 0.0
    %382 = vmatprep.subr.mxu0 0.0
    %383 = vmatpush1.msra.mxu0 0.0
    %384 = vmatprep.subr.mxu0 0.0
    %385 = vmatpush1.msra.mxu0 0.0
    %386 = vmatprep.subr.mxu0 0.0
    %387 = vmatpush1.msra.mxu0 0.0
    %388 = vmatprep.subr.mxu0 0.0
    %389 = vmatpush1.msra.mxu0 0.0
    %390 = vmatprep.subr.mxu0 0.0
    %391 = vmatpush1.msra.mxu0 0.0
    %392 = vmatprep.subr.mxu0 0.0
    %393 = vmatpush1.msra.mxu0 0.0
    %394 = vmatprep.subr.mxu0 0.0
    %395 = vmatpush1.msra.mxu0 0.0
    %396 = vmatprep.subr.mxu0 0.0
    %397 = vmatpush1.msra.mxu0 0.0
    %398 = vmatprep.subr.mxu0 0.0
    %399 = vmatpush1.msra.mxu0 0.0
    %400 = vmatprep.subr.mxu0 0.0
    %401 = vmatpush1.msra.mxu0 0.0
    %402 = vmatprep.subr.mxu0 0.0
    %403 = vmatpush1.msra.mxu0 0.0
    %404 = vmatprep.subr.mxu0 0.0
    %405 = vmatpush1.msra.mxu0 0.0
    %406 = vmatprep.subr.mxu0 0.0
    %407 = vmatpush1.msra.mxu0 0.0
    %408 = vmatprep.subr.mxu0 0.0
    %409 = vmatpush1.msra.mxu0 0.0
    %410 = vmatprep.subr.mxu0 0.0
    %411 = vmatpush1.msra.mxu0 0.0
    %412 = vmatprep.subr.mxu0 0.0
    %413 = vmatpush1.msra.mxu0 0.0
    %414 = vmatprep.subr.mxu0 0.0
    %415 = vmatpush1.msra.mxu0 0.0
    %416 = vmatprep.subr.mxu0 0.0
    %417 = vmatpush1.msra.mxu0 0.0
    %418 = vmatprep.subr.mxu0 0.0
    %419 = vmatpush1.msra.mxu0 0.0
    %420 = vmatprep.subr.mxu0 0.0
    %421 = vmatpush1.msra.mxu0 0.0
    %422 = vmatprep.subr.mxu0 0.0
    %423 = vmatpush1.msra.mxu0 0.0
    %424 = vmatprep.subr.mxu0 0.0
    %425 = vmatpush1.msra.mxu0 0.0
    %426 = vmatprep.subr.mxu0 0.0
    %427 = vmatpush1.msra.mxu0 0.0
    %428 = vmatprep.mubr.f32.mxu0 0.0
    %429 = vmatmul.mubr.f32.gmra.mrb[0].mxu0 %v362
    %v430 = vpop.f32.mrb[0].mxu0
    %v431 = vadd.f32 %v360, %v430
    %v432 = vpop.f32.mrb[0].mxu0
    %433 = vdwg.mxu0
    %vm434 = vcmask 31744
    %435 = vst.msk [vmem:[#allocation13] sm:$0xff] %vm434, %v431
    // Predicated region
    $region50: #{tpu_custom_call.1} parent=1 // pred_check
      _
    $region51: #{tpu_custom_call.1} parent=1 // pred_check_branch
      %437 = sbr.rel (0) target = $region53
    $region52: #{tpu_custom_call.1} parent=1 // pred_region
      %s439 = ssub.s32 128, 128
      %440 = vsyncadd [#allocation4], %s439
      %s442 = sshll.u32 [#allocation13], 4
      %s443 = int_to_ptr.vmem [resolvable:$true] %s442
      %445 = dma.vmem_to_hbm [thread:$0]  %s443, 128, %s6, [#allocation4]
    $region53: #{tpu_custom_call.1} parent=1 // pred_fallthru
      _
    // Predicated region
    $region54: #{tpu_custom_call.1} parent=1 // pred_check
      _
    $region55: #{tpu_custom_call.1} parent=1 // pred_check_branch
      %447 = sbr.rel (0) target = $region57
    $region56: #{tpu_custom_call.1} parent=1 // pred_region
      %448 = dma.done [#allocation4], 128
    $region57: #{tpu_custom_call.1} parent=1 // pred_fallthru
      _
    %449 = vsyncpa [#allocation3], 1
    %450 = vsyncpa [#allocation6], 1
    %451 = vsyncpa [#allocation9], 1
    %452 = vsyncpa [#allocation12], 1
    %453 = vsyncpa [#allocation4], 1

</llo_original>
